<compile_context>
chip_gen: v7x
topology: tpu7x:2x2x1
jax: 0.10.0
libtpu: 0.0.40
codegen_flags: <defaults>
</compile_context>

<pallas_src>
import jax
import jax.numpy as jnp
import numpy as np
from jax.experimental import pallas as pl
from jax.experimental.pallas import tpu as pltpu


def conv1x1_hswish_relu_kernel(w_ref, b_ref, x_ref, o_ref):
    """1x1 conv (channel mix) + fused relu(hardswish(.)) on dense slabs.

    w_ref: SMEM (C_out, C_in) f32
    b_ref: SMEM (C_out,)      f32
    x_ref: VMEM (1, C_in,  RB, 128) f32
    o_ref: VMEM (1, C_out, RB, 128) f32
    """
    c_out, c_in = w_ref.shape
    for co in range(c_out):
        # Channel mix on the VPU with full-vreg (RB, 128) operands; weights and
        # bias are SMEM scalar reads (no vector broadcasts from VMEM).
        v1 = x_ref[0, 0] * w_ref[co, 0]
        for ci in range(1, c_in):
            v1 = v1 + x_ref[0, ci] * w_ref[co, ci]
        v1 = v1 + b_ref[co]
        # relu(v1 * clamp(v1+3, 0, 6) / 6) == max(v1,0) * min(v1+3,6) * (1/6)
        o_ref[0, co] = jnp.maximum(v1, 0.0) * jnp.minimum(v1 + 3.0, 6.0) * (1.0 / 6.0)


def model_forward(x, w, b, *, row_block=512):
    """x: (N, C_in, H, W) f32; w: (C_out, C_in, 1, 1); b: (C_out,)."""
    x = x.astype(jnp.float32)
    N, C_in, H, W = x.shape
    C_out = w.shape[0]

    # PyTorch conv output size: floor((H + 2*1 - 1)/2) + 1
    OH = (H + 1) // 2 + 1
    OW = (W + 1) // 2 + 1
    # Interior output positions sample original pixels x[2*oh-1, 2*ow-1].
    IH, IW = H // 2, W // 2

    w2 = w.reshape(C_out, C_in).astype(jnp.float32)
    b1 = b.reshape(C_out).astype(jnp.float32)

    # Border output positions only ever see zero padding -> per-channel const.
    border = jnp.maximum(b1, 0.0) * jnp.minimum(b1 + 3.0, 6.0) * (1.0 / 6.0)
    out = jnp.broadcast_to(border.reshape(1, C_out, 1, 1), (N, C_out, OH, OW))

    if IH == 0 or IW == 0:
        return out

    # Interior: strided slice of the (decimated) input only -- no full pad copy.
    xs = x[:, :, 1::2, 1::2]                      # (N, C_in, IH, IW)
    L = IH * IW
    R = (L + 127) // 128                          # rows of 128 lanes
    R8 = ((R + 7) // 8) * 8                       # sublane-align
    RB = min(row_block, R8)                       # row tile (multiple of 8)
    Rp = ((R8 + RB - 1) // RB) * RB               # pad rows to tile multiple
    Lp = Rp * 128

    x_flat = xs.reshape(N, C_in, L)               # free reshape (contiguous)
    if Lp != L:
        x_flat = jnp.pad(x_flat, ((0, 0), (0, 0), (0, Lp - L)))
    x_slab = x_flat.reshape(N, C_in, Rp, 128)     # per-channel dense slabs

    out_slab = pl.pallas_call(
        conv1x1_hswish_relu_kernel,
        out_shape=jax.ShapeDtypeStruct((N, C_out, Rp, 128), jnp.float32),
        grid=(N, Rp // RB),
        in_specs=[
            pl.BlockSpec(memory_space=pltpu.MemorySpace.SMEM),   # weights (C_out, C_in)
            pl.BlockSpec(memory_space=pltpu.MemorySpace.SMEM),   # bias (C_out,)
            pl.BlockSpec((1, C_in, RB, 128), lambda n, r: (n, 0, r, 0)),
        ],
        out_specs=pl.BlockSpec((1, C_out, RB, 128), lambda n, r: (n, 0, r, 0)),
        compiler_params=pltpu.CompilerParams(
            dimension_semantics=("parallel", "parallel")),
    )(w2, b1, x_slab)

    interior = out_slab.reshape(N, C_out, Lp)[:, :, :L].reshape(N, C_out, IH, IW)
    return out.at[:, :, 1:1 + IH, 1:1 + IW].set(interior)


def reference_forward(x, w, b):
    v1 = jax.lax.conv_general_dilated(
        x, w, window_strides=(2, 2), padding=((1, 1), (1, 1)),
        dimension_numbers=("NCHW", "OIHW", "NCHW"))
    v1 = v1 + b.reshape(1, -1, 1, 1)
    v4 = jnp.clip(v1 + 3.0, 0.0, 6.0)
    return jnp.maximum(v1 * v4 / 6.0, 0.0)


if __name__ == "__main__":
    key = jax.random.PRNGKey(0)
    kx, kw, kb = jax.random.split(key, 3)

    # Shapes from the PyTorch spec: x1 = torch.randn(2, 3, 128, 128).
    N, C, H, W = 2, 3, 128, 128
    x = jax.random.normal(kx, (N, C, H, W), dtype=jnp.float32)

    # Deterministic Conv2d(3, 3, 1) params (PyTorch-style uniform init bound).
    bound = 1.0 / np.sqrt(C * 1 * 1)
    w = jax.random.uniform(kw, (C, C, 1, 1), jnp.float32, -bound, bound)
    b = jax.random.uniform(kb, (C,), jnp.float32, -bound, bound)

    out = jax.block_until_ready(model_forward(x, w, b))
    ref = jax.block_until_ready(reference_forward(x, w, b))
    np.testing.assert_allclose(np.asarray(out), np.asarray(ref),
                               rtol=1e-5, atol=1e-5)

    print("KERNEL_OK")
</pallas_src>

<mosaic_0001>
module attributes {stable_mosaic.version = 11 : i64} {
  func.func @conv1x1_hswish_relu_kernel(%arg0: i32, %arg1: i32, %arg2: memref<3x3xf32, #tpu.memory_space<smem>>, %arg3: memref<3xf32, #tpu.memory_space<smem>>, %arg4: memref<1x3x32x128xf32, #tpu.memory_space<vmem>>, %arg5: memref<1x3x32x128xf32, #tpu.memory_space<vmem>>) attributes {dimension_semantics = [#tpu.dimension_semantics<parallel>, #tpu.dimension_semantics<parallel>], iteration_bounds = array<i64: 2, 1>, scalar_prefetch = 0 : i64, scratch_operands = 0 : i64, tpu.core_type = #tpu.core_type<tc>, window_params = [{transform_indices = @transform_0, window_bounds = array<i64: 3, 3>}, {transform_indices = @transform_1, window_bounds = array<i64: 3>}, {transform_indices = @transform_2, window_bounds = array<i64: 1, 3, 32, 128>}, {transform_indices = @transform_3, window_bounds = array<i64: 1, 3, 32, 128>}]} {
    %c0 = arith.constant 0 : index
    %c0_0 = arith.constant 0 : index
    %c0_1 = arith.constant 0 : index
    %c0_2 = arith.constant 0 : index
    %0 = vector.load %arg4[%c0, %c0_0, %c0_1, %c0_2] : memref<1x3x32x128xf32, #tpu.memory_space<vmem>>, vector<1x1x32x128xf32>
    %1 = vector.shape_cast %0 : vector<1x1x32x128xf32> to vector<32x128xf32>
    %c0_3 = arith.constant 0 : index
    %c0_4 = arith.constant 0 : index
    %2 = memref.load %arg2[%c0_3, %c0_4] : memref<3x3xf32, #tpu.memory_space<smem>>
    %3 = vector.broadcast %2 : f32 to vector<32x128xf32>
    %4 = arith.mulf %1, %3 : vector<32x128xf32>
    %c0_5 = arith.constant 0 : index
    %c1 = arith.constant 1 : index
    %c0_6 = arith.constant 0 : index
    %c0_7 = arith.constant 0 : index
    %5 = vector.load %arg4[%c0_5, %c1, %c0_6, %c0_7] : memref<1x3x32x128xf32, #tpu.memory_space<vmem>>, vector<1x1x32x128xf32>
    %6 = vector.shape_cast %5 : vector<1x1x32x128xf32> to vector<32x128xf32>
    %c0_8 = arith.constant 0 : index
    %c1_9 = arith.constant 1 : index
    %7 = memref.load %arg2[%c0_8, %c1_9] : memref<3x3xf32, #tpu.memory_space<smem>>
    %8 = vector.broadcast %7 : f32 to vector<32x128xf32>
    %9 = arith.mulf %6, %8 : vector<32x128xf32>
    %10 = arith.addf %4, %9 : vector<32x128xf32>
    %c0_10 = arith.constant 0 : index
    %c2 = arith.constant 2 : index
    %c0_11 = arith.constant 0 : index
    %c0_12 = arith.constant 0 : index
    %11 = vector.load %arg4[%c0_10, %c2, %c0_11, %c0_12] : memref<1x3x32x128xf32, #tpu.memory_space<vmem>>, vector<1x1x32x128xf32>
    %12 = vector.shape_cast %11 : vector<1x1x32x128xf32> to vector<32x128xf32>
    %c0_13 = arith.constant 0 : index
    %c2_14 = arith.constant 2 : index
    %13 = memref.load %arg2[%c0_13, %c2_14] : memref<3x3xf32, #tpu.memory_space<smem>>
    %14 = vector.broadcast %13 : f32 to vector<32x128xf32>
    %15 = arith.mulf %12, %14 : vector<32x128xf32>
    %16 = arith.addf %10, %15 : vector<32x128xf32>
    %c0_15 = arith.constant 0 : index
    %17 = memref.load %arg3[%c0_15] : memref<3xf32, #tpu.memory_space<smem>>
    %18 = vector.broadcast %17 : f32 to vector<32x128xf32>
    %19 = arith.addf %16, %18 : vector<32x128xf32>
    %cst = arith.constant 0.000000e+00 : f32
    %20 = vector.broadcast %cst : f32 to vector<32x128xf32>
    %21 = arith.maximumf %19, %20 : vector<32x128xf32>
    %cst_16 = arith.constant 3.000000e+00 : f32
    %22 = vector.broadcast %cst_16 : f32 to vector<32x128xf32>
    %23 = arith.addf %19, %22 : vector<32x128xf32>
    %cst_17 = arith.constant 6.000000e+00 : f32
    %24 = vector.broadcast %cst_17 : f32 to vector<32x128xf32>
    %25 = arith.minimumf %23, %24 : vector<32x128xf32>
    %26 = arith.mulf %21, %25 : vector<32x128xf32>
    %cst_18 = arith.constant 0.166666672 : f32
    %27 = vector.broadcast %cst_18 : f32 to vector<32x128xf32>
    %28 = arith.mulf %26, %27 : vector<32x128xf32>
    %c0_19 = arith.constant 0 : index
    %c0_20 = arith.constant 0 : index
    %c0_21 = arith.constant 0 : index
    %c0_22 = arith.constant 0 : index
    %29 = vector.load %arg5[%c0_19, %c0_20, %c0_21, %c0_22] : memref<1x3x32x128xf32, #tpu.memory_space<vmem>>, vector<1x1x32x128xf32>
    %30 = vector.shape_cast %29 : vector<1x1x32x128xf32> to vector<32x128xf32>
    %31 = vector.shape_cast %28 : vector<32x128xf32> to vector<1x1x32x128xf32>
    tpu.vector_store %arg5[%c0_19, %c0_20, %c0_21, %c0_22], %31 {strides = array<i32>} : memref<1x3x32x128xf32, #tpu.memory_space<vmem>>, vector<1x1x32x128xf32>,
    %c0_23 = arith.constant 0 : index
    %c0_24 = arith.constant 0 : index
    %c0_25 = arith.constant 0 : index
    %c0_26 = arith.constant 0 : index
    %32 = vector.load %arg4[%c0_23, %c0_24, %c0_25, %c0_26] : memref<1x3x32x128xf32, #tpu.memory_space<vmem>>, vector<1x1x32x128xf32>
    %33 = vector.shape_cast %32 : vector<1x1x32x128xf32> to vector<32x128xf32>
    %c1_27 = arith.constant 1 : index
    %c0_28 = arith.constant 0 : index
    %34 = memref.load %arg2[%c1_27, %c0_28] : memref<3x3xf32, #tpu.memory_space<smem>>
    %35 = vector.broadcast %34 : f32 to vector<32x128xf32>
    %36 = arith.mulf %33, %35 : vector<32x128xf32>
    %c0_29 = arith.constant 0 : index
    %c1_30 = arith.constant 1 : index
    %c0_31 = arith.constant 0 : index
    %c0_32 = arith.constant 0 : index
    %37 = vector.load %arg4[%c0_29, %c1_30, %c0_31, %c0_32] : memref<1x3x32x128xf32, #tpu.memory_space<vmem>>, vector<1x1x32x128xf32>
    %38 = vector.shape_cast %37 : vector<1x1x32x128xf32> to vector<32x128xf32>
    %c1_33 = arith.constant 1 : index
    %c1_34 = arith.constant 1 : index
    %39 = memref.load %arg2[%c1_33, %c1_34] : memref<3x3xf32, #tpu.memory_space<smem>>
    %40 = vector.broadcast %39 : f32 to vector<32x128xf32>
    %41 = arith.mulf %38, %40 : vector<32x128xf32>
    %42 = arith.addf %36, %41 : vector<32x128xf32>
    %c0_35 = arith.constant 0 : index
    %c2_36 = arith.constant 2 : index
    %c0_37 = arith.constant 0 : index
    %c0_38 = arith.constant 0 : index
    %43 = vector.load %arg4[%c0_35, %c2_36, %c0_37, %c0_38] : memref<1x3x32x128xf32, #tpu.memory_space<vmem>>, vector<1x1x32x128xf32>
    %44 = vector.shape_cast %43 : vector<1x1x32x128xf32> to vector<32x128xf32>
    %c1_39 = arith.constant 1 : index
    %c2_40 = arith.constant 2 : index
    %45 = memref.load %arg2[%c1_39, %c2_40] : memref<3x3xf32, #tpu.memory_space<smem>>
    %46 = vector.broadcast %45 : f32 to vector<32x128xf32>
    %47 = arith.mulf %44, %46 : vector<32x128xf32>
    %48 = arith.addf %42, %47 : vector<32x128xf32>
    %c1_41 = arith.constant 1 : index
    %49 = memref.load %arg3[%c1_41] : memref<3xf32, #tpu.memory_space<smem>>
    %50 = vector.broadcast %49 : f32 to vector<32x128xf32>
    %51 = arith.addf %48, %50 : vector<32x128xf32>
    %cst_42 = arith.constant 0.000000e+00 : f32
    %52 = vector.broadcast %cst_42 : f32 to vector<32x128xf32>
    %53 = arith.maximumf %51, %52 : vector<32x128xf32>
    %cst_43 = arith.constant 3.000000e+00 : f32
    %54 = vector.broadcast %cst_43 : f32 to vector<32x128xf32>
    %55 = arith.addf %51, %54 : vector<32x128xf32>
    %cst_44 = arith.constant 6.000000e+00 : f32
    %56 = vector.broadcast %cst_44 : f32 to vector<32x128xf32>
    %57 = arith.minimumf %55, %56 : vector<32x128xf32>
    %58 = arith.mulf %53, %57 : vector<32x128xf32>
    %cst_45 = arith.constant 0.166666672 : f32
    %59 = vector.broadcast %cst_45 : f32 to vector<32x128xf32>
    %60 = arith.mulf %58, %59 : vector<32x128xf32>
    %c0_46 = arith.constant 0 : index
    %c1_47 = arith.constant 1 : index
    %c0_48 = arith.constant 0 : index
    %c0_49 = arith.constant 0 : index
    %61 = vector.load %arg5[%c0_46, %c1_47, %c0_48, %c0_49] : memref<1x3x32x128xf32, #tpu.memory_space<vmem>>, vector<1x1x32x128xf32>
    %62 = vector.shape_cast %61 : vector<1x1x32x128xf32> to vector<32x128xf32>
    %63 = vector.shape_cast %60 : vector<32x128xf32> to vector<1x1x32x128xf32>
    tpu.vector_store %arg5[%c0_46, %c1_47, %c0_48, %c0_49], %63 {strides = array<i32>} : memref<1x3x32x128xf32, #tpu.memory_space<vmem>>, vector<1x1x32x128xf32>,
    %c0_50 = arith.constant 0 : index
    %c0_51 = arith.constant 0 : index
    %c0_52 = arith.constant 0 : index
    %c0_53 = arith.constant 0 : index
    %64 = vector.load %arg4[%c0_50, %c0_51, %c0_52, %c0_53] : memref<1x3x32x128xf32, #tpu.memory_space<vmem>>, vector<1x1x32x128xf32>
    %65 = vector.shape_cast %64 : vector<1x1x32x128xf32> to vector<32x128xf32>
    %c2_54 = arith.constant 2 : index
    %c0_55 = arith.constant 0 : index
    %66 = memref.load %arg2[%c2_54, %c0_55] : memref<3x3xf32, #tpu.memory_space<smem>>
    %67 = vector.broadcast %66 : f32 to vector<32x128xf32>
    %68 = arith.mulf %65, %67 : vector<32x128xf32>
    %c0_56 = arith.constant 0 : index
    %c1_57 = arith.constant 1 : index
    %c0_58 = arith.constant 0 : index
    %c0_59 = arith.constant 0 : index
    %69 = vector.load %arg4[%c0_56, %c1_57, %c0_58, %c0_59] : memref<1x3x32x128xf32, #tpu.memory_space<vmem>>, vector<1x1x32x128xf32>
    %70 = vector.shape_cast %69 : vector<1x1x32x128xf32> to vector<32x128xf32>
    %c2_60 = arith.constant 2 : index
    %c1_61 = arith.constant 1 : index
    %71 = memref.load %arg2[%c2_60, %c1_61] : memref<3x3xf32, #tpu.memory_space<smem>>
    %72 = vector.broadcast %71 : f32 to vector<32x128xf32>
    %73 = arith.mulf %70, %72 : vector<32x128xf32>
    %74 = arith.addf %68, %73 : vector<32x128xf32>
    %c0_62 = arith.constant 0 : index
    %c2_63 = arith.constant 2 : index
    %c0_64 = arith.constant 0 : index
    %c0_65 = arith.constant 0 : index
    %75 = vector.load %arg4[%c0_62, %c2_63, %c0_64, %c0_65] : memref<1x3x32x128xf32, #tpu.memory_space<vmem>>, vector<1x1x32x128xf32>
    %76 = vector.shape_cast %75 : vector<1x1x32x128xf32> to vector<32x128xf32>
    %c2_66 = arith.constant 2 : index
    %c2_67 = arith.constant 2 : index
    %77 = memref.load %arg2[%c2_66, %c2_67] : memref<3x3xf32, #tpu.memory_space<smem>>
    %78 = vector.broadcast %77 : f32 to vector<32x128xf32>
    %79 = arith.mulf %76, %78 : vector<32x128xf32>
    %80 = arith.addf %74, %79 : vector<32x128xf32>
    %c2_68 = arith.constant 2 : index
    %81 = memref.load %arg3[%c2_68] : memref<3xf32, #tpu.memory_space<smem>>
    %82 = vector.broadcast %81 : f32 to vector<32x128xf32>
    %83 = arith.addf %80, %82 : vector<32x128xf32>
    %cst_69 = arith.constant 0.000000e+00 : f32
    %84 = vector.broadcast %cst_69 : f32 to vector<32x128xf32>
    %85 = arith.maximumf %83, %84 : vector<32x128xf32>
    %cst_70 = arith.constant 3.000000e+00 : f32
    %86 = vector.broadcast %cst_70 : f32 to vector<32x128xf32>
    %87 = arith.addf %83, %86 : vector<32x128xf32>
    %cst_71 = arith.constant 6.000000e+00 : f32
    %88 = vector.broadcast %cst_71 : f32 to vector<32x128xf32>
    %89 = arith.minimumf %87, %88 : vector<32x128xf32>
    %90 = arith.mulf %85, %89 : vector<32x128xf32>
    %cst_72 = arith.constant 0.166666672 : f32
    %91 = vector.broadcast %cst_72 : f32 to vector<32x128xf32>
    %92 = arith.mulf %90, %91 : vector<32x128xf32>
    %c0_73 = arith.constant 0 : index
    %c2_74 = arith.constant 2 : index
    %c0_75 = arith.constant 0 : index
    %c0_76 = arith.constant 0 : index
    %93 = vector.load %arg5[%c0_73, %c2_74, %c0_75, %c0_76] : memref<1x3x32x128xf32, #tpu.memory_space<vmem>>, vector<1x1x32x128xf32>
    %94 = vector.shape_cast %93 : vector<1x1x32x128xf32> to vector<32x128xf32>
    %95 = vector.shape_cast %92 : vector<32x128xf32> to vector<1x1x32x128xf32>
    tpu.vector_store %arg5[%c0_73, %c2_74, %c0_75, %c0_76], %95 {strides = array<i32>} : memref<1x3x32x128xf32, #tpu.memory_space<vmem>>, vector<1x1x32x128xf32>,
    return
  }
  func.func @transform_0(%arg0: i32, %arg1: i32) -> (i32, i32) {
    %c0_i32 = arith.constant 0 : i32
    %c0_i32_0 = arith.constant 0 : i32
    %c0_i32_1 = arith.constant 0 : i32
    return %c0_i32, %c0_i32_0 : i32, i32
  }
  func.func @transform_1(%arg0: i32, %arg1: i32) -> i32 {
    %c0_i32 = arith.constant 0 : i32
    %c0_i32_0 = arith.constant 0 : i32
    return %c0_i32 : i32
  }
  func.func @transform_2(%arg0: i32, %arg1: i32) -> (i32, i32, i32, i32) {
    %c0_i32 = arith.constant 0 : i32
    %c0_i32_0 = arith.constant 0 : i32
    %c0_i32_1 = arith.constant 0 : i32
    return %arg0, %c0_i32, %arg1, %c0_i32_0 : i32, i32, i32, i32
  }
  func.func @transform_3(%arg0: i32, %arg1: i32) -> (i32, i32, i32, i32) {
    %c0_i32 = arith.constant 0 : i32
    %c0_i32_0 = arith.constant 0 : i32
    %c0_i32_1 = arith.constant 0 : i32
    return %arg0, %c0_i32, %arg1, %c0_i32_0 : i32, i32, i32, i32
  }
}

</mosaic_0001>

<llo_original>
// kernel: tpu_custom_call.1
$region0: #{tpu_custom_call.1}
  #allocation0 [shape = 'u32[]', space=smem, size = 0x4, offset = 0x4, fixed_abs, tag = 'smem constant byte address 0x4 - core index']
  #allocation1 [shape = 'u32[144,128]{1,0:T(1,128)}', space=vmem, size = 0x12000, scoped, tag = 'internal scratch']
  %s0 = inlined_call_operand.hbm [shape: f32[3,3], index: 0, kind: input, shape index: {}]
  %s1 = inlined_call_operand.vmem [shape: f32[3], index: 1, kind: input, shape index: {}]
  %s2 = inlined_call_operand.hbm [shape: f32[2,3,32,128], index: 2, kind: input, shape index: {}]
  %s3 = inlined_call_operand.hbm [shape: f32[2,3,32,128], index: 3, kind: output, shape index: {}]
  %s4 = sld [smem:[#allocation0]]
  $region57: #{tpu_custom_call.1} parent=0
    _
  %s6 = ssub.s32 1, %s4
  %s7 = scalar_select 0, %s6, %s4
  $region1: #{tpu_custom_call.1} parent=0
    #allocation2 [shape = 'u8[2048]{0}', space=smem, size = 0x800, scoped, tag = 'input window, operand 0, single buffered']
    #allocation3 [shape = 's32[2]{0}', space=sflag, size = 0x8, scoped, tag = 'scoped memory for tpu_custom_call.1']
    #allocation4 [shape = 's32[2]{0}', space=sflag, size = 0x8, scoped, tag = 'scoped memory for tpu_custom_call.1']
    #allocation5 [shape = 's32[2]{0}', space=sflag, size = 0x8, scoped, tag = 'scoped memory for tpu_custom_call.1']
    #allocation6 [shape = 's32[2]{0}', space=sflag, size = 0x8, scoped, tag = 'scoped memory for tpu_custom_call.1']
    #allocation7 [shape = 'u8[512]{0}', space=smem, size = 0x200, scoped, tag = 'input window, operand 1, single buffered']
    #allocation8 [shape = 'u8[98304]{0}', space=vmem, size = 0x18000, scoped, tag = 'input window, operand 2']
    #allocation9 [shape = 'u8[98304]{0}', space=vmem, size = 0x18000, scoped, tag = 'output window, operand 0']
    %8 = vsyncpa [#allocation5], 0
    %9 = vsyncpa [#allocation6], 0
    %10 = vsyncpa [#allocation3], 0
    %s11 = scalar_lea.sflag [#allocation3], 1
    %12 = vsyncpa %s11, 0
    %13 = vsyncpa [#allocation4], 0
    %s14 = scalar_lea.sflag [#allocation4], 1
    %15 = vsyncpa %s14, 0
    loop: start=0, step=1, limit=4
    $region2: #{tpu_custom_call.1} parent=1 // loop_pre_header
      _
    $region3: #{tpu_custom_call.1} parent=1 // loop_header
      %s17 = sphi 0, %s21
      %p18 = scmp.ge.s32.totalorder %s17, 4
      %s24 = sphi 0, %s36
      %s25 = sphi 0, %s32
      %s26 = sphi 0, %s24
      %s27 = sphi 0, %s25
      %s28 = sphi 0, %s26
      %s29 = sphi 0, %s27
      %s37 = sphi 0, %s37
      %s39 = sphi 0, %s37
      %s40 = sphi 0, %s39
      %s54 = sphi 0, %s40
      %s58 = sphi 0, %s58
      %s60 = sphi 0, %s58
      %s61 = sphi 0, %s60
      %s75 = sphi 0, %s61
      %s83 = sphi 0, %s85
      %s86 = sphi 0, %s83
      %s87 = sphi 0, %s86
      %s103 = sphi 0, %s87
      %s111 = sphi 0, %s113
      %s114 = sphi 0, %s111
      %s115 = sphi 0, %s114
      %s131 = sphi 0, %s115
    $region4: #{tpu_custom_call.1} parent=1 // loop_header_branch
      %20 = sbr.rel (%p18) target = $region8
    $region5: #{tpu_custom_call.1} parent=1 // loop_body
      %s22 = ssub.s32 %s17, 1
      %s23 = ssub.s32 %s17, 2
      %s30 = sadd.s32 1, %s25
      %p31 = scmp.ge.s32.totalorder %s30, 1
      %s32 = scalar_select %p31, 0, %s30
      %s33 = sadd.s32 1, %s24
      %s34 = scalar_select %p31, %s33, %s24
      %p35 = scmp.ge.s32.totalorder %s34, 2
      %s36 = scalar_select %p35, 0, %s34
      %s38 = sadd.s32 %s37, 1
      %p41 = scmp.eq.s32.totalorder %s17, 1
      %p42 = scmp.ne.s32.totalorder %s37, %s39
      %p43 = scmp.eq.s32.totalorder %s17, 0
      %p44 = por %p42, %p43
      %p45 = scmp.ne.s32.totalorder %s37, %s39
      %p46 = scmp.eq.s32.totalorder %s22, 1
      %p47 = por %p45, %p46
      %p48 = scmp.ne.s32.totalorder %s39, %s40
      %p49 = scmp.eq.s32.totalorder %s22, 0
      %p50 = por %p48, %p49
      %p51 = scmp.ne.s32.totalorder %s39, %s40
      %p52 = scmp.eq.s32.totalorder %s23, 1
      %p53 = por %p51, %p52
      %p55 = scmp.ne.s32.totalorder %s40, %s54
      %p56 = scmp.eq.s32.totalorder %s23, 0
      %p57 = por %p55, %p56
      %s59 = sadd.s32 %s58, 1
      %p62 = scmp.eq.s32.totalorder %s17, 1
      %p63 = scmp.ne.s32.totalorder %s58, %s60
      %p64 = scmp.eq.s32.totalorder %s17, 0
      %p65 = por %p63, %p64
      %p66 = scmp.ne.s32.totalorder %s58, %s60
      %p67 = scmp.eq.s32.totalorder %s22, 1
      %p68 = por %p66, %p67
      %p69 = scmp.ne.s32.totalorder %s60, %s61
      %p70 = scmp.eq.s32.totalorder %s22, 0
      %p71 = por %p69, %p70
      %p72 = scmp.ne.s32.totalorder %s60, %s61
      %p73 = scmp.eq.s32.totalorder %s23, 1
      %p74 = por %p72, %p73
      %p76 = scmp.ne.s32.totalorder %s61, %s75
      %p77 = scmp.eq.s32.totalorder %s23, 0
      %p78 = por %p76, %p77
      %s79 = ssub.s32 %s24, %s36
      %s80 = ssub.s32 %s25, %s32
      %s81 = sor.u32 %s79, %s80
      %p82 = scmp.eq.s32.totalorder %s81, 0
      %s84 = sadd.s32 %s83, 1
      %s85 = scalar_select %p82, %s83, %s84
      %p88 = pneg %p82
      %p89 = scmp.eq.s32.totalorder %s17, 1
      %p90 = por %p88, %p89
      %p91 = scmp.ne.s32.totalorder %s83, %s86
      %p92 = scmp.eq.s32.totalorder %s17, 0
      %p93 = por %p91, %p92
      %p94 = scmp.ne.s32.totalorder %s83, %s86
      %p95 = scmp.eq.s32.totalorder %s22, 1
      %p96 = por %p94, %p95
      %p97 = scmp.ne.s32.totalorder %s86, %s87
      %p98 = scmp.eq.s32.totalorder %s22, 0
      %p99 = por %p97, %p98
      %p100 = scmp.ne.s32.totalorder %s86, %s87
      %p101 = scmp.eq.s32.totalorder %s23, 1
      %p102 = por %p100, %p101
      %p104 = scmp.ne.s32.totalorder %s87, %s103
      %p105 = scmp.eq.s32.totalorder %s23, 0
      %p106 = por %p104, %p105
      %s107 = ssub.s32 %s24, %s36
      %s108 = ssub.s32 %s25, %s32
      %s109 = sor.u32 %s107, %s108
      %p110 = scmp.eq.s32.totalorder %s109, 0
      %s112 = sadd.s32 %s111, 1
      %s113 = scalar_select %p110, %s111, %s112
      %p116 = pneg %p110
      %p117 = scmp.eq.s32.totalorder %s17, 1
      %p118 = por %p116, %p117
      %p119 = scmp.ne.s32.totalorder %s111, %s114
      %p120 = scmp.eq.s32.totalorder %s17, 0
      %p121 = por %p119, %p120
      %p122 = scmp.ne.s32.totalorder %s111, %s114
      %p123 = scmp.eq.s32.totalorder %s22, 1
      %p124 = por %p122, %p123
      %p125 = scmp.ne.s32.totalorder %s114, %s115
      %p126 = scmp.eq.s32.totalorder %s22, 0
      %p127 = por %p125, %p126
      %p128 = scmp.ne.s32.totalorder %s114, %s115
      %p129 = scmp.eq.s32.totalorder %s23, 1
      %p130 = por %p128, %p129
      %p132 = scmp.ne.s32.totalorder %s115, %s131
      %p133 = scmp.eq.s32.totalorder %s23, 0
      %p134 = por %p132, %p133
      %p135 = scmp.le.s32.totalorder 1, %s17
      %p136 = scmp.lt.s32.totalorder %s17, 3
      %p137 = pnand %p135, %p136
      %p138 = pneg %p137
      // Predicated region
      $region9: #{tpu_custom_call.1} parent=5 // pred_check
        _
      $region10: #{tpu_custom_call.1} parent=5 // pred_check_branch
        %140 = sbr.rel (%p137) target = $region12
      $region11: #{tpu_custom_call.1} parent=5 // pred_region
        %s141 = ssub.s32 %s17, 1
        // Predicated region
        $region13: #{tpu_custom_call.1} parent=11 // pred_check
          %p142 = pneg %p50
        $region14: #{tpu_custom_call.1} parent=11 // pred_check_branch
          %144 = sbr.rel (%p142) target = $region16
        $region15: #{tpu_custom_call.1} parent=11 // pred_region
          %s146 = ssub.s32 64, 64
          %147 = vsyncadd [#allocation5], %s146
          %150 = dma.hbm_to_smem %s0, 64, [#allocation2], [#allocation5]
        $region16: #{tpu_custom_call.1} parent=11 // pred_fallthru
          _
        // Predicated region
        $region17: #{tpu_custom_call.1} parent=11 // pred_check
          %p151 = pneg %p71
        $region18: #{tpu_custom_call.1} parent=11 // pred_check_branch
          %153 = sbr.rel (%p151) target = $region20
        $region19: #{tpu_custom_call.1} parent=11 // pred_region
          %s155 = ssub.s32 16, 16
          %156 = vsyncadd [#allocation6], %s155
          %s158 = sshll.u32 %s1, 4
          %s159 = int_to_ptr.vmem [resolvable:$true] %s158
          %161 = dma.vmem_to_smem %s159, 16, [#allocation7], [#allocation6]
        $region20: #{tpu_custom_call.1} parent=11 // pred_fallthru
          _
      $region12: #{tpu_custom_call.1} parent=5 // pred_fallthru
        _
      %p162 = scmp.lt.s32.totalorder %s17, 2
      // Predicated region
      $region21: #{tpu_custom_call.1} parent=5 // pred_check
        %p163 = pneg %p162
      $region22: #{tpu_custom_call.1} parent=5 // pred_check_branch
        %165 = sbr.rel (%p163) target = $region24
      $region23: #{tpu_custom_call.1} parent=5 // pred_region
        // Predicated region
        $region25: #{tpu_custom_call.1} parent=23 // pred_check
          %p166 = pneg %p93
        $region26: #{tpu_custom_call.1} parent=23 // pred_check_branch
          %168 = sbr.rel (%p166) target = $region28
        $region27: #{tpu_custom_call.1} parent=23 // pred_region
          %s169 = sand.u32 %s83, 1
          %s170 = scalar_lea.sflag [#allocation3], %s169
          %s171 = sand.u32 %s83, 1
          %s172 = smul.addr %s171, 96
          %s173 = scalar_lea.vmem [#allocation8], %s172
          %s174 = smul.u32 4, %s25
          %s176 = ssub.s32 1536, 1536
          %177 = vsyncadd %s170, %s176
          %s178 = smul.addr %s24, 12
          %s179 = sadd.s32 %s174, %s178
          %s180 = smul.addr %s179, 128
          %s181 = scalar_lea.hbm %s2, %s180
          %s182 = sshll.u32 %s173, 4
          %s183 = int_to_ptr.vmem [resolvable:$true] %s182
          %188 = dma.hbm_to_vmem [thread:$0]  %s181, 1536, %s183, %s170, 128, 128, 8
        $region28: #{tpu_custom_call.1} parent=23 // pred_fallthru
          _
      $region24: #{tpu_custom_call.1} parent=5 // pred_fallthru
        _
      %p189 = scmp.le.s32.totalorder 1, %s17
      %p190 = scmp.lt.s32.totalorder %s17, 3
      %p191 = pnand %p189, %p190
      %p192 = pneg %p191
      // Predicated region
      $region29: #{tpu_custom_call.1} parent=5 // pred_check
        _
      $region30: #{tpu_custom_call.1} parent=5 // pred_check_branch
        %194 = sbr.rel (%p191) target = $region32
      $region31: #{tpu_custom_call.1} parent=5 // pred_region
        %s195 = ssub.s32 %s17, 1
        // Predicated region
        $region33: #{tpu_custom_call.1} parent=31 // pred_check
          %p196 = pneg %p50
        $region34: #{tpu_custom_call.1} parent=31 // pred_check_branch
          %198 = sbr.rel (%p196) target = $region36
        $region35: #{tpu_custom_call.1} parent=31 // pred_region
          %199 = dma.done [#allocation5], 64
        $region36: #{tpu_custom_call.1} parent=31 // pred_fallthru
          _
        // Predicated region
        $region37: #{tpu_custom_call.1} parent=31 // pred_check
          %p200 = pneg %p71
        $region38: #{tpu_custom_call.1} parent=31 // pred_check_branch
          %202 = sbr.rel (%p200) target = $region40
        $region39: #{tpu_custom_call.1} parent=31 // pred_region
          %203 = dma.done [#allocation6], 16
        $region40: #{tpu_custom_call.1} parent=31 // pred_fallthru
          _
        %s204 = sand.u32 %s86, 1
        %s205 = scalar_lea.sflag [#allocation3], %s204
        %s206 = sand.u32 %s86, 1
        %s207 = smul.addr %s206, 96
        %s208 = scalar_lea.vmem [#allocation8], %s207
        // Predicated region
        $region41: #{tpu_custom_call.1} parent=31 // pred_check
          %p209 = pneg %p99
        $region42: #{tpu_custom_call.1} parent=31 // pred_check_branch
          %211 = sbr.rel (%p209) target = $region44
        $region43: #{tpu_custom_call.1} parent=31 // pred_region
          %212 = dma.done %s205, 1536
        $region44: #{tpu_custom_call.1} parent=31 // pred_fallthru
          _
        %213 = sfence
        %p214 = pneg %p50
        %p215 = pneg %p47
        %p216 = pneg %p71
        %p217 = pneg %p68
        %s218 = sand.u32 %s86, 1
        %s219 = scalar_lea.sflag [#allocation3], %s218
        %s220 = sand.u32 %s86, 1
        %s221 = smul.addr %s220, 96
        %s222 = scalar_lea.vmem [#allocation8], %s221
        %p223 = pneg %p99
        %p224 = pneg %p96
        %p225 = pneg %p127
        %p226 = pneg %p124
        %s227 = sand.u32 %s114, 1
        %s228 = scalar_lea.sflag [#allocation4], %s227
        %s229 = sand.u32 %s114, 1
        %s230 = smul.addr %s229, 96
        %s231 = scalar_lea.vmem [#allocation9], %s230
        %s232 = smul.u32 4, %s27
        %s233 = smul.u32 4, %s27
        %v234 = vld [vmem:[%s208] sm:$0xff]
        %v235 = vld [vmem:[%s208 + $0x8] sm:$0xff]
        %v236 = vld [vmem:[%s208 + $0x10] sm:$0xff]
        %v237 = vld [vmem:[%s208 + $0x18] sm:$0xff]
        %s238 = sld [smem:[#allocation2]]
        %v239 = vstv %s238
        %v240 = vmul.f32 %v234, %v239
        %v241 = vmul.f32 %v235, %v239
        %v242 = vmul.f32 %v236, %v239
        %v243 = vmul.f32 %v237, %v239
        %s244 = scalar_lea.vmem %s208, 32 [#allocation8]
        %v245 = vld [vmem:[%s244] sm:$0xff]
        %v246 = vld [vmem:[%s244 + $0x8] sm:$0xff]
        %v247 = vld [vmem:[%s244 + $0x10] sm:$0xff]
        %v248 = vld [vmem:[%s244 + $0x18] sm:$0xff]
        %s249 = sld [smem:[#allocation2 + $0x1]]
        %v250 = vstv %s249
        %v251 = vmul.f32 %v245, %v250
        %v252 = vmul.f32 %v246, %v250
        %v253 = vmul.f32 %v247, %v250
        %v254 = vmul.f32 %v248, %v250
        %v255 = vadd.f32 %v240, %v251
        %v256 = vadd.f32 %v241, %v252
        %v257 = vadd.f32 %v242, %v253
        %v258 = vadd.f32 %v243, %v254
        %s259 = scalar_lea.vmem %s208, 64 [#allocation8]
        %v260 = vld [vmem:[%s259] sm:$0xff]
        %v261 = vld [vmem:[%s259 + $0x8] sm:$0xff]
        %v262 = vld [vmem:[%s259 + $0x10] sm:$0xff]
        %v263 = vld [vmem:[%s259 + $0x18] sm:$0xff]
        %s264 = sld [smem:[#allocation2 + $0x2]]
        %v265 = vstv %s264
        %v266 = vmul.f32 %v260, %v265
        %v267 = vmul.f32 %v261, %v265
        %v268 = vmul.f32 %v262, %v265
        %v269 = vmul.f32 %v263, %v265
        %v270 = vadd.f32 %v255, %v266
        %v271 = vadd.f32 %v256, %v267
        %v272 = vadd.f32 %v257, %v268
        %v273 = vadd.f32 %v258, %v269
        %s274 = sld [smem:[#allocation7]]
        %v275 = vstv %s274
        %v276 = vadd.f32 %v270, %v275
        %v277 = vadd.f32 %v271, %v275
        %v278 = vadd.f32 %v272, %v275
        %v279 = vadd.f32 %v273, %v275
        %v280 = vmax.f32 %v276, 0.0
        %v281 = vmax.f32 %v277, 0.0
        %v282 = vmax.f32 %v278, 0.0
        %v283 = vmax.f32 %v279, 0.0
        %v284 = vadd.f32 %v276, 3.0
        %v285 = vadd.f32 %v277, 3.0
        %v286 = vadd.f32 %v278, 3.0
        %v287 = vadd.f32 %v279, 3.0
        %v288 = vmin.f32 %v284, 6.0
        %v289 = vmin.f32 %v285, 6.0
        %v290 = vmin.f32 %v286, 6.0
        %v291 = vmin.f32 %v287, 6.0
        %v292 = vmul.f32 %v280, %v288
        %v293 = vmul.f32 %v281, %v289
        %v294 = vmul.f32 %v282, %v290
        %v295 = vmul.f32 %v283, %v291
        %v296 = vmul.f32 %v292, 0.16666667
        %v297 = vmul.f32 %v293, 0.16666667
        %v298 = vmul.f32 %v294, 0.16666667
        %v299 = vmul.f32 %v295, 0.16666667
        %300 = vst [vmem:[%s231] sm:$0xff] %v296
        %301 = vst [vmem:[%s231 + $0x8] sm:$0xff] %v297
        %302 = vst [vmem:[%s231 + $0x10] sm:$0xff] %v298
        %303 = vst [vmem:[%s231 + $0x18] sm:$0xff] %v299
        %v304 = vld [vmem:[%s208] sm:$0xff]
        %v305 = vld [vmem:[%s208 + $0x8] sm:$0xff]
        %v306 = vld [vmem:[%s208 + $0x10] sm:$0xff]
        %v307 = vld [vmem:[%s208 + $0x18] sm:$0xff]
        %s308 = sld [smem:[#allocation2 + $0x80]]
        %v309 = vstv %s308
        %v310 = vmul.f32 %v304, %v309
        %v311 = vmul.f32 %v305, %v309
        %v312 = vmul.f32 %v306, %v309
        %v313 = vmul.f32 %v307, %v309
        %v314 = vld [vmem:[%s244] sm:$0xff]
        %v315 = vld [vmem:[%s244 + $0x8] sm:$0xff]
        %v316 = vld [vmem:[%s244 + $0x10] sm:$0xff]
        %v317 = vld [vmem:[%s244 + $0x18] sm:$0xff]
        %s318 = sld [smem:[#allocation2 + $0x81]]
        %v319 = vstv %s318
        %v320 = vmul.f32 %v314, %v319
        %v321 = vmul.f32 %v315, %v319
        %v322 = vmul.f32 %v316, %v319
        %v323 = vmul.f32 %v317, %v319
        %v324 = vadd.f32 %v310, %v320
        %v325 = vadd.f32 %v311, %v321
        %v326 = vadd.f32 %v312, %v322
        %v327 = vadd.f32 %v313, %v323
        %v328 = vld [vmem:[%s259] sm:$0xff]
        %v329 = vld [vmem:[%s259 + $0x8] sm:$0xff]
        %v330 = vld [vmem:[%s259 + $0x10] sm:$0xff]
        %v331 = vld [vmem:[%s259 + $0x18] sm:$0xff]
        %s332 = sld [smem:[#allocation2 + $0x82]]
        %v333 = vstv %s332
        %v334 = vmul.f32 %v328, %v333
        %v335 = vmul.f32 %v329, %v333
        %v336 = vmul.f32 %v330, %v333
        %v337 = vmul.f32 %v331, %v333
        %v338 = vadd.f32 %v324, %v334
        %v339 = vadd.f32 %v325, %v335
        %v340 = vadd.f32 %v326, %v336
        %v341 = vadd.f32 %v327, %v337
        %s342 = sld [smem:[#allocation7 + $0x1]]
        %v343 = vstv %s342
        %v344 = vadd.f32 %v338, %v343
        %v345 = vadd.f32 %v339, %v343
        %v346 = vadd.f32 %v340, %v343
        %v347 = vadd.f32 %v341, %v343
        %v348 = vmax.f32 %v344, 0.0
        %v349 = vmax.f32 %v345, 0.0
        %v350 = vmax.f32 %v346, 0.0
        %v351 = vmax.f32 %v347, 0.0
        %v352 = vadd.f32 %v344, 3.0
        %v353 = vadd.f32 %v345, 3.0
        %v354 = vadd.f32 %v346, 3.0
        %v355 = vadd.f32 %v347, 3.0
        %v356 = vmin.f32 %v352, 6.0
        %v357 = vmin.f32 %v353, 6.0
        %v358 = vmin.f32 %v354, 6.0
        %v359 = vmin.f32 %v355, 6.0
        %v360 = vmul.f32 %v348, %v356
        %v361 = vmul.f32 %v349, %v357
        %v362 = vmul.f32 %v350, %v358
        %v363 = vmul.f32 %v351, %v359
        %v364 = vmul.f32 %v360, 0.16666667
        %v365 = vmul.f32 %v361, 0.16666667
        %v366 = vmul.f32 %v362, 0.16666667
        %v367 = vmul.f32 %v363, 0.16666667
        %s368 = scalar_lea.vmem %s231, 32 [#allocation9]
        %369 = vst [vmem:[%s368] sm:$0xff] %v364
        %370 = vst [vmem:[%s368 + $0x8] sm:$0xff] %v365
        %371 = vst [vmem:[%s368 + $0x10] sm:$0xff] %v366
        %372 = vst [vmem:[%s368 + $0x18] sm:$0xff] %v367
        %v373 = vld [vmem:[%s208] sm:$0xff]
        %v374 = vld [vmem:[%s208 + $0x8] sm:$0xff]
        %v375 = vld [vmem:[%s208 + $0x10] sm:$0xff]
        %v376 = vld [vmem:[%s208 + $0x18] sm:$0xff]
        %s377 = sld [smem:[#allocation2 + $0x100]]
        %v378 = vstv %s377
        %v379 = vmul.f32 %v373, %v378
        %v380 = vmul.f32 %v374, %v378
        %v381 = vmul.f32 %v375, %v378
        %v382 = vmul.f32 %v376, %v378
        %v383 = vld [vmem:[%s244] sm:$0xff]
        %v384 = vld [vmem:[%s244 + $0x8] sm:$0xff]
        %v385 = vld [vmem:[%s244 + $0x10] sm:$0xff]
        %v386 = vld [vmem:[%s244 + $0x18] sm:$0xff]
        %s387 = sld [smem:[#allocation2 + $0x101]]
        %v388 = vstv %s387
        %v389 = vmul.f32 %v383, %v388
        %v390 = vmul.f32 %v384, %v388
        %v391 = vmul.f32 %v385, %v388
        %v392 = vmul.f32 %v386, %v388
        %v393 = vadd.f32 %v379, %v389
        %v394 = vadd.f32 %v380, %v390
        %v395 = vadd.f32 %v381, %v391
        %v396 = vadd.f32 %v382, %v392
        %v397 = vld [vmem:[%s259] sm:$0xff]
        %v398 = vld [vmem:[%s259 + $0x8] sm:$0xff]
        %v399 = vld [vmem:[%s259 + $0x10] sm:$0xff]
        %v400 = vld [vmem:[%s259 + $0x18] sm:$0xff]
        %s401 = sld [smem:[#allocation2 + $0x102]]
        %v402 = vstv %s401
        %v403 = vmul.f32 %v397, %v402
        %v404 = vmul.f32 %v398, %v402
        %v405 = vmul.f32 %v399, %v402
        %v406 = vmul.f32 %v400, %v402
        %v407 = vadd.f32 %v393, %v403
        %v408 = vadd.f32 %v394, %v404
        %v409 = vadd.f32 %v395, %v405
        %v410 = vadd.f32 %v396, %v406
        %s411 = sld [smem:[#allocation7 + $0x2]]
        %v412 = vstv %s411
        %v413 = vadd.f32 %v407, %v412
        %v414 = vadd.f32 %v408, %v412
        %v415 = vadd.f32 %v409, %v412
        %v416 = vadd.f32 %v410, %v412
        %v417 = vmax.f32 %v413, 0.0
        %v418 = vmax.f32 %v414, 0.0
        %v419 = vmax.f32 %v415, 0.0
        %v420 = vmax.f32 %v416, 0.0
        %v421 = vadd.f32 %v413, 3.0
        %v422 = vadd.f32 %v414, 3.0
        %v423 = vadd.f32 %v415, 3.0
        %v424 = vadd.f32 %v416, 3.0
        %v425 = vmin.f32 %v421, 6.0
        %v426 = vmin.f32 %v422, 6.0
        %v427 = vmin.f32 %v423, 6.0
        %v428 = vmin.f32 %v424, 6.0
        %v429 = vmul.f32 %v417, %v425
        %v430 = vmul.f32 %v418, %v426
        %v431 = vmul.f32 %v419, %v427
        %v432 = vmul.f32 %v420, %v428
        %v433 = vmul.f32 %v429, 0.16666667
        %v434 = vmul.f32 %v430, 0.16666667
        %v435 = vmul.f32 %v431, 0.16666667
        %v436 = vmul.f32 %v432, 0.16666667
        %s437 = scalar_lea.vmem %s231, 64 [#allocation9]
        %438 = vst [vmem:[%s437] sm:$0xff] %v433
        %439 = vst [vmem:[%s437 + $0x8] sm:$0xff] %v434
        %440 = vst [vmem:[%s437 + $0x10] sm:$0xff] %v435
        %441 = vst [vmem:[%s437 + $0x18] sm:$0xff] %v436
        %s442 = sand.u32 %s114, 1
        %s443 = scalar_lea.sflag [#allocation4], %s442
        %s444 = sand.u32 %s114, 1
        %s445 = smul.addr %s444, 96
        %s446 = scalar_lea.vmem [#allocation9], %s445
        // Predicated region
        $region45: #{tpu_custom_call.1} parent=31 // pred_check
          %p447 = pneg %p124
        $region46: #{tpu_custom_call.1} parent=31 // pred_check_branch
          %449 = sbr.rel (%p447) target = $region48
        $region47: #{tpu_custom_call.1} parent=31 // pred_region
          %s450 = smul.u32 4, %s27
          %s452 = ssub.s32 1536, 1536
          %453 = vsyncadd %s443, %s452
          %s454 = smul.addr %s26, 12
          %s455 = sadd.s32 %s450, %s454
          %s456 = smul.addr %s455, 128
          %s457 = scalar_lea.hbm %s3, %s456
          %s458 = sshll.u32 %s446, 4
          %s459 = int_to_ptr.vmem [resolvable:$true] %s458
          %464 = dma.vmem_to_hbm [thread:$0]  %s459, 1536, %s457, %s443, 128, 128, 8
        $region48: #{tpu_custom_call.1} parent=31 // pred_fallthru
          _
      $region32: #{tpu_custom_call.1} parent=5 // pred_fallthru
        _
      %p465 = scmp.le.s32.totalorder 2, %s17
      // Predicated region
      $region49: #{tpu_custom_call.1} parent=5 // pred_check
        %p466 = pneg %p465
      $region50: #{tpu_custom_call.1} parent=5 // pred_check_branch
        %468 = sbr.rel (%p466) target = $region52
      $region51: #{tpu_custom_call.1} parent=5 // pred_region
        %s469 = ssub.s32 %s17, 2
        // Predicated region
        $region53: #{tpu_custom_call.1} parent=51 // pred_check
          %p470 = pneg %p130
        $region54: #{tpu_custom_call.1} parent=51 // pred_check_branch
          %472 = sbr.rel (%p470) target = $region56
        $region55: #{tpu_custom_call.1} parent=51 // pred_region
          %s473 = sand.u32 %s115, 1
          %s474 = scalar_lea.sflag [#allocation4], %s473
          %s475 = sand.u32 %s115, 1
          %s476 = smul.addr %s475, 96
          %s477 = scalar_lea.vmem [#allocation9], %s476
          %478 = dma.done %s474, 1536
        $region56: #{tpu_custom_call.1} parent=51 // pred_fallthru
          _
      $region52: #{tpu_custom_call.1} parent=5 // pred_fallthru
        _
    $region6: #{tpu_custom_call.1} parent=1 // loop_footer
      %s21 = sadd.s32 1, %s17
    $region7: #{tpu_custom_call.1} parent=1 // loop_footer_branch
      %16 = sbr.rel target = $region3
    $region8: #{tpu_custom_call.1} parent=1 // loop_exit
      _
    %479 = vsyncpa [#allocation3], 1
    %s480 = scalar_lea.sflag [#allocation3], 1
    %481 = vsyncpa %s480, 1
    %482 = vsyncpa [#allocation4], 1
    %s483 = scalar_lea.sflag [#allocation4], 1
    %484 = vsyncpa %s483, 1
    %485 = vsyncpa [#allocation5], 1
    %s486 = scalar_lea.sflag [#allocation5], 1
    %487 = vsyncpa %s486, 1
    %488 = vsyncpa [#allocation6], 1
    %s489 = scalar_lea.sflag [#allocation6], 1
    %490 = vsyncpa %s489, 1

</llo_original>
